<compile_context>
chip_gen: v6e
topology: v6e:2x2x1
jax: 0.10.0
libtpu: 0.0.40
codegen_flags: <defaults>
</compile_context>

<pallas_src>
import jax
import jax.numpy as jnp
from jax.experimental import pallas as pl
from jax.experimental.pallas import tpu as pltpu


# ----------------------------------------------------------------------------
# Pallas kernel: gather rows of an HBM-resident embedding table via per-row
# async DMAs.
#   ids_ref   : SMEM int32[N]          token ids
#   table_hbm : ANY  f32[vocab, emb]   embedding matrix, stays in HBM
#   out_ref   : VMEM f32[N, emb]       gathered embeddings
#   buf       : VMEM f32[N, emb]       DMA landing buffer (scratch)
#   sem       : DMA semaphores, shape (N,)
# ----------------------------------------------------------------------------
def _row_gather_kernel(ids_ref, table_hbm, out_ref, buf, sem):
    n_rows, _ = out_ref.shape

    # N is small and static -> Python loop unrolls at trace time.  All row
    # DMAs are started before any wait, so they are in flight concurrently
    # and total latency is roughly one row-DMA latency, not N of them.
    copies = []
    for i in range(n_rows):
        row = ids_ref[i]                       # dynamic scalar from SMEM
        c = pltpu.make_async_copy(
            table_hbm.at[pl.ds(row, 1), :],    # (1, emb) row in HBM
            buf.at[pl.ds(i, 1), :],            # (1, emb) row in VMEM
            sem.at[i],
        )
        c.start()
        copies.append(c)
    for c in copies:
        c.wait()

    # Single lane-dense store of the whole gathered slab.
    out_ref[...] = buf[...]


def embedding_lookup(ids, table):
    """ids: int32[N], table: f32[vocab, emb_dim] -> f32[N, emb_dim] (exact gather)."""
    n = int(ids.shape[0])
    _, emb_dim = table.shape

    return pl.pallas_call(
        _row_gather_kernel,
        out_shape=jax.ShapeDtypeStruct((n, emb_dim), table.dtype),
        in_specs=[
            pl.BlockSpec(memory_space=pltpu.MemorySpace.SMEM),   # ids -> SMEM
            pl.BlockSpec(memory_space=pl.ANY),                   # table stays in HBM
        ],
        out_specs=pl.BlockSpec(memory_space=pltpu.MemorySpace.VMEM),
        scratch_shapes=[
            pltpu.VMEM((n, emb_dim), table.dtype),               # DMA landing buffer
            pltpu.SemaphoreType.DMA((n,)),                       # one sem per row
        ],
    )(ids.astype(jnp.int32), table)


# ----------------------------------------------------------------------------
# Synthetic "BaseModel": deterministic tokenizer + embedding table.
# (No checkpoint loading; parameters are initialized in-script.)
# ----------------------------------------------------------------------------
_MONTHS = ['January', 'February', 'March', 'April', 'May', 'June', 'July',
           'August', 'September', 'October', 'November', 'December']
_WEEKS = ['Sunday', 'Monday', 'Tuesday', 'Wednesday', 'Thursday', 'Friday',
          'Saturday']


class BaseModelJAX:
    def __init__(self, vocab_size=128, emb_dim=128, key=None):
        self.emb_dim = emb_dim
        self.vocab_size = vocab_size
        # deterministic synthetic vocabulary: months + weekdays + filler tokens
        words = _MONTHS + _WEEKS
        words += [f"tok{i}" for i in range(vocab_size - len(words))]
        self._vocab = {w: i for i, w in enumerate(words)}
        if key is None:
            key = jax.random.PRNGKey(0)
        # embedding table (the nn.Embedding weight of the LLM backbone)
        self.embedding_table = jax.random.normal(
            key, (vocab_size, emb_dim), dtype=jnp.float32)
        self._calendar_cache = None

    # tokenizer.convert_tokens_to_ids equivalent
    def convert_tokens_to_ids(self, tokens):
        return jnp.asarray([self._vocab[t] for t in tokens], dtype=jnp.int32)

    # getembedding equivalent: Pallas HBM-resident row-DMA gather kernel
    def getembedding(self, ids_flat):
        return embedding_lookup(ids_flat, self.embedding_table)

    # Fused month+week lookup: one pallas_call for both calendar tables
    # (workload is entirely launch-overhead bound at this size).
    def _calendar_embeddings(self):
        if self._calendar_cache is None:
            ids = self.convert_tokens_to_ids(_MONTHS + _WEEKS)   # (19,)
            emb = self.getembedding(ids)                         # (19, emb_dim)
            n_m = len(_MONTHS)
            self._calendar_cache = (emb[:n_m], emb[n_m:])
        return self._calendar_cache

    def getmonthembedding(self):
        month_emb, _ = self._calendar_embeddings()
        return month_emb.reshape(-1, self.emb_dim)               # (12, emb_dim)

    def getweekembedding(self):
        _, week_emb = self._calendar_embeddings()
        return week_emb.reshape(-1, self.emb_dim)                # (7, emb_dim)

    def forward(self, x):
        # TODO(synk): BaseModel.forward raises NotImplementedError in PyTorch;
        # no compute to translate.
        raise NotImplementedError('error')


if __name__ == "__main__":
    key = jax.random.PRNGKey(0)
    model = BaseModelJAX(vocab_size=128, emb_dim=128, key=key)

    month_emb = model.getmonthembedding()
    week_emb = model.getweekembedding()
    jax.block_until_ready(month_emb)
    jax.block_until_ready(week_emb)

    # reference check against plain-JAX gather (DMA gather is exact)
    month_ids = model.convert_tokens_to_ids(_MONTHS)
    week_ids = model.convert_tokens_to_ids(_WEEKS)
    ref_month = model.embedding_table[month_ids]
    ref_week = model.embedding_table[week_ids]

    assert month_emb.shape == (12, 128)
    assert week_emb.shape == (7, 128)
    assert jnp.allclose(month_emb, ref_month)
    assert jnp.allclose(week_emb, ref_week)

    print("KERNEL_OK")
</pallas_src>

<mosaic_0001>
module attributes {stable_mosaic.version = 11 : i64} {
  func.func @_row_gather_kernel(%arg0: memref<19xi32, #tpu.memory_space<smem>>, %arg1: memref<128x128xf32, #tpu.memory_space<any>>, %arg2: memref<19x128xf32, #tpu.memory_space<vmem>>, %arg3: memref<19x128xf32, #tpu.memory_space<vmem>>, %arg4: memref<19x!tpu.dma_semaphore, #tpu.memory_space<semaphore_mem>>) attributes {dimension_semantics = [], scalar_prefetch = 0 : i64, scratch_operands = 2 : i64, tpu.core_type = #tpu.core_type<tc>} {
    %c0 = arith.constant 0 : index
    %0 = memref.load %arg0[%c0] : memref<19xi32, #tpu.memory_space<smem>>
    %c0_i32 = arith.constant 0 : i32
    %c0_i32_0 = arith.constant 0 : i32
    %1 = tpu.memref_slice %arg1[%0, %c0_i32_0] : memref<128x128xf32, #tpu.memory_space<any>> -> memref<1x128xf32, #tpu.memory_space<any>>
    %c0_i32_1 = arith.constant 0 : i32
    %c0_i32_2 = arith.constant 0 : i32
    %2 = tpu.memref_slice %arg3[%c0_i32_1, %c0_i32_2] : memref<19x128xf32, #tpu.memory_space<vmem>> -> memref<1x128xf32, #tpu.memory_space<vmem>>
    %3 = tpu.memref_slice %arg4[%c0_i32] : memref<19x!tpu.dma_semaphore, #tpu.memory_space<semaphore_mem>> -> memref<1x!tpu.dma_semaphore, #tpu.memory_space<semaphore_mem>>
    %4 = tpu.memref_squeeze %3 : memref<1x!tpu.dma_semaphore, #tpu.memory_space<semaphore_mem>> -> memref<!tpu.dma_semaphore, #tpu.memory_space<semaphore_mem>>
    tpu.enqueue_dma source(%1 : memref<1x128xf32, #tpu.memory_space<any>>) target(%2 : memref<1x128xf32, #tpu.memory_space<vmem>>) target_semaphore(%4 : memref<!tpu.dma_semaphore, #tpu.memory_space<semaphore_mem>>)
    %c1 = arith.constant 1 : index
    %5 = memref.load %arg0[%c1] : memref<19xi32, #tpu.memory_space<smem>>
    %c1_i32 = arith.constant 1 : i32
    %c0_i32_3 = arith.constant 0 : i32
    %6 = tpu.memref_slice %arg1[%5, %c0_i32_3] : memref<128x128xf32, #tpu.memory_space<any>> -> memref<1x128xf32, #tpu.memory_space<any>>
    %c1_i32_4 = arith.constant 1 : i32
    %c0_i32_5 = arith.constant 0 : i32
    %7 = tpu.memref_slice %arg3[%c1_i32_4, %c0_i32_5] : memref<19x128xf32, #tpu.memory_space<vmem>> -> memref<1x128xf32, #tpu.memory_space<vmem>>
    %8 = tpu.memref_slice %arg4[%c1_i32] : memref<19x!tpu.dma_semaphore, #tpu.memory_space<semaphore_mem>> -> memref<1x!tpu.dma_semaphore, #tpu.memory_space<semaphore_mem>>
    %9 = tpu.memref_squeeze %8 : memref<1x!tpu.dma_semaphore, #tpu.memory_space<semaphore_mem>> -> memref<!tpu.dma_semaphore, #tpu.memory_space<semaphore_mem>>
    tpu.enqueue_dma source(%6 : memref<1x128xf32, #tpu.memory_space<any>>) target(%7 : memref<1x128xf32, #tpu.memory_space<vmem>>) target_semaphore(%9 : memref<!tpu.dma_semaphore, #tpu.memory_space<semaphore_mem>>)
    %c2 = arith.constant 2 : index
    %10 = memref.load %arg0[%c2] : memref<19xi32, #tpu.memory_space<smem>>
    %c2_i32 = arith.constant 2 : i32
    %c0_i32_6 = arith.constant 0 : i32
    %11 = tpu.memref_slice %arg1[%10, %c0_i32_6] : memref<128x128xf32, #tpu.memory_space<any>> -> memref<1x128xf32, #tpu.memory_space<any>>
    %c2_i32_7 = arith.constant 2 : i32
    %c0_i32_8 = arith.constant 0 : i32
    %12 = tpu.memref_slice %arg3[%c2_i32_7, %c0_i32_8] : memref<19x128xf32, #tpu.memory_space<vmem>> -> memref<1x128xf32, #tpu.memory_space<vmem>>
    %13 = tpu.memref_slice %arg4[%c2_i32] : memref<19x!tpu.dma_semaphore, #tpu.memory_space<semaphore_mem>> -> memref<1x!tpu.dma_semaphore, #tpu.memory_space<semaphore_mem>>
    %14 = tpu.memref_squeeze %13 : memref<1x!tpu.dma_semaphore, #tpu.memory_space<semaphore_mem>> -> memref<!tpu.dma_semaphore, #tpu.memory_space<semaphore_mem>>
    tpu.enqueue_dma source(%11 : memref<1x128xf32, #tpu.memory_space<any>>) target(%12 : memref<1x128xf32, #tpu.memory_space<vmem>>) target_semaphore(%14 : memref<!tpu.dma_semaphore, #tpu.memory_space<semaphore_mem>>)
    %c3 = arith.constant 3 : index
    %15 = memref.load %arg0[%c3] : memref<19xi32, #tpu.memory_space<smem>>
    %c3_i32 = arith.constant 3 : i32
    %c0_i32_9 = arith.constant 0 : i32
    %16 = tpu.memref_slice %arg1[%15, %c0_i32_9] : memref<128x128xf32, #tpu.memory_space<any>> -> memref<1x128xf32, #tpu.memory_space<any>>
    %c3_i32_10 = arith.constant 3 : i32
    %c0_i32_11 = arith.constant 0 : i32
    %17 = tpu.memref_slice %arg3[%c3_i32_10, %c0_i32_11] : memref<19x128xf32, #tpu.memory_space<vmem>> -> memref<1x128xf32, #tpu.memory_space<vmem>>
    %18 = tpu.memref_slice %arg4[%c3_i32] : memref<19x!tpu.dma_semaphore, #tpu.memory_space<semaphore_mem>> -> memref<1x!tpu.dma_semaphore, #tpu.memory_space<semaphore_mem>>
    %19 = tpu.memref_squeeze %18 : memref<1x!tpu.dma_semaphore, #tpu.memory_space<semaphore_mem>> -> memref<!tpu.dma_semaphore, #tpu.memory_space<semaphore_mem>>
    tpu.enqueue_dma source(%16 : memref<1x128xf32, #tpu.memory_space<any>>) target(%17 : memref<1x128xf32, #tpu.memory_space<vmem>>) target_semaphore(%19 : memref<!tpu.dma_semaphore, #tpu.memory_space<semaphore_mem>>)
    %c4 = arith.constant 4 : index
    %20 = memref.load %arg0[%c4] : memref<19xi32, #tpu.memory_space<smem>>
    %c4_i32 = arith.constant 4 : i32
    %c0_i32_12 = arith.constant 0 : i32
    %21 = tpu.memref_slice %arg1[%20, %c0_i32_12] : memref<128x128xf32, #tpu.memory_space<any>> -> memref<1x128xf32, #tpu.memory_space<any>>
    %c4_i32_13 = arith.constant 4 : i32
    %c0_i32_14 = arith.constant 0 : i32
    %22 = tpu.memref_slice %arg3[%c4_i32_13, %c0_i32_14] : memref<19x128xf32, #tpu.memory_space<vmem>> -> memref<1x128xf32, #tpu.memory_space<vmem>>
    %23 = tpu.memref_slice %arg4[%c4_i32] : memref<19x!tpu.dma_semaphore, #tpu.memory_space<semaphore_mem>> -> memref<1x!tpu.dma_semaphore, #tpu.memory_space<semaphore_mem>>
    %24 = tpu.memref_squeeze %23 : memref<1x!tpu.dma_semaphore, #tpu.memory_space<semaphore_mem>> -> memref<!tpu.dma_semaphore, #tpu.memory_space<semaphore_mem>>
    tpu.enqueue_dma source(%21 : memref<1x128xf32, #tpu.memory_space<any>>) target(%22 : memref<1x128xf32, #tpu.memory_space<vmem>>) target_semaphore(%24 : memref<!tpu.dma_semaphore, #tpu.memory_space<semaphore_mem>>)
    %c5 = arith.constant 5 : index
    %25 = memref.load %arg0[%c5] : memref<19xi32, #tpu.memory_space<smem>>
    %c5_i32 = arith.constant 5 : i32
    %c0_i32_15 = arith.constant 0 : i32
    %26 = tpu.memref_slice %arg1[%25, %c0_i32_15] : memref<128x128xf32, #tpu.memory_space<any>> -> memref<1x128xf32, #tpu.memory_space<any>>
    %c5_i32_16 = arith.constant 5 : i32
    %c0_i32_17 = arith.constant 0 : i32
    %27 = tpu.memref_slice %arg3[%c5_i32_16, %c0_i32_17] : memref<19x128xf32, #tpu.memory_space<vmem>> -> memref<1x128xf32, #tpu.memory_space<vmem>>
    %28 = tpu.memref_slice %arg4[%c5_i32] : memref<19x!tpu.dma_semaphore, #tpu.memory_space<semaphore_mem>> -> memref<1x!tpu.dma_semaphore, #tpu.memory_space<semaphore_mem>>
    %29 = tpu.memref_squeeze %28 : memref<1x!tpu.dma_semaphore, #tpu.memory_space<semaphore_mem>> -> memref<!tpu.dma_semaphore, #tpu.memory_space<semaphore_mem>>
    tpu.enqueue_dma source(%26 : memref<1x128xf32, #tpu.memory_space<any>>) target(%27 : memref<1x128xf32, #tpu.memory_space<vmem>>) target_semaphore(%29 : memref<!tpu.dma_semaphore, #tpu.memory_space<semaphore_mem>>)
    %c6 = arith.constant 6 : index
    %30 = memref.load %arg0[%c6] : memref<19xi32, #tpu.memory_space<smem>>
    %c6_i32 = arith.constant 6 : i32
    %c0_i32_18 = arith.constant 0 : i32
    %31 = tpu.memref_slice %arg1[%30, %c0_i32_18] : memref<128x128xf32, #tpu.memory_space<any>> -> memref<1x128xf32, #tpu.memory_space<any>>
    %c6_i32_19 = arith.constant 6 : i32
    %c0_i32_20 = arith.constant 0 : i32
    %32 = tpu.memref_slice %arg3[%c6_i32_19, %c0_i32_20] : memref<19x128xf32, #tpu.memory_space<vmem>> -> memref<1x128xf32, #tpu.memory_space<vmem>>
    %33 = tpu.memref_slice %arg4[%c6_i32] : memref<19x!tpu.dma_semaphore, #tpu.memory_space<semaphore_mem>> -> memref<1x!tpu.dma_semaphore, #tpu.memory_space<semaphore_mem>>
    %34 = tpu.memref_squeeze %33 : memref<1x!tpu.dma_semaphore, #tpu.memory_space<semaphore_mem>> -> memref<!tpu.dma_semaphore, #tpu.memory_space<semaphore_mem>>
    tpu.enqueue_dma source(%31 : memref<1x128xf32, #tpu.memory_space<any>>) target(%32 : memref<1x128xf32, #tpu.memory_space<vmem>>) target_semaphore(%34 : memref<!tpu.dma_semaphore, #tpu.memory_space<semaphore_mem>>)
    %c7 = arith.constant 7 : index
    %35 = memref.load %arg0[%c7] : memref<19xi32, #tpu.memory_space<smem>>
    %c7_i32 = arith.constant 7 : i32
    %c0_i32_21 = arith.constant 0 : i32
    %36 = tpu.memref_slice %arg1[%35, %c0_i32_21] : memref<128x128xf32, #tpu.memory_space<any>> -> memref<1x128xf32, #tpu.memory_space<any>>
    %c7_i32_22 = arith.constant 7 : i32
    %c0_i32_23 = arith.constant 0 : i32
    %37 = tpu.memref_slice %arg3[%c7_i32_22, %c0_i32_23] : memref<19x128xf32, #tpu.memory_space<vmem>> -> memref<1x128xf32, #tpu.memory_space<vmem>>
    %38 = tpu.memref_slice %arg4[%c7_i32] : memref<19x!tpu.dma_semaphore, #tpu.memory_space<semaphore_mem>> -> memref<1x!tpu.dma_semaphore, #tpu.memory_space<semaphore_mem>>
    %39 = tpu.memref_squeeze %38 : memref<1x!tpu.dma_semaphore, #tpu.memory_space<semaphore_mem>> -> memref<!tpu.dma_semaphore, #tpu.memory_space<semaphore_mem>>
    tpu.enqueue_dma source(%36 : memref<1x128xf32, #tpu.memory_space<any>>) target(%37 : memref<1x128xf32, #tpu.memory_space<vmem>>) target_semaphore(%39 : memref<!tpu.dma_semaphore, #tpu.memory_space<semaphore_mem>>)
    %c8 = arith.constant 8 : index
    %40 = memref.load %arg0[%c8] : memref<19xi32, #tpu.memory_space<smem>>
    %c8_i32 = arith.constant 8 : i32
    %c0_i32_24 = arith.constant 0 : i32
    %41 = tpu.memref_slice %arg1[%40, %c0_i32_24] : memref<128x128xf32, #tpu.memory_space<any>> -> memref<1x128xf32, #tpu.memory_space<any>>
    %c8_i32_25 = arith.constant 8 : i32
    %c0_i32_26 = arith.constant 0 : i32
    %42 = tpu.memref_slice %arg3[%c8_i32_25, %c0_i32_26] : memref<19x128xf32, #tpu.memory_space<vmem>> -> memref<1x128xf32, #tpu.memory_space<vmem>>
    %43 = tpu.memref_slice %arg4[%c8_i32] : memref<19x!tpu.dma_semaphore, #tpu.memory_space<semaphore_mem>> -> memref<1x!tpu.dma_semaphore, #tpu.memory_space<semaphore_mem>>
    %44 = tpu.memref_squeeze %43 : memref<1x!tpu.dma_semaphore, #tpu.memory_space<semaphore_mem>> -> memref<!tpu.dma_semaphore, #tpu.memory_space<semaphore_mem>>
    tpu.enqueue_dma source(%41 : memref<1x128xf32, #tpu.memory_space<any>>) target(%42 : memref<1x128xf32, #tpu.memory_space<vmem>>) target_semaphore(%44 : memref<!tpu.dma_semaphore, #tpu.memory_space<semaphore_mem>>)
    %c9 = arith.constant 9 : index
    %45 = memref.load %arg0[%c9] : memref<19xi32, #tpu.memory_space<smem>>
    %c9_i32 = arith.constant 9 : i32
    %c0_i32_27 = arith.constant 0 : i32
    %46 = tpu.memref_slice %arg1[%45, %c0_i32_27] : memref<128x128xf32, #tpu.memory_space<any>> -> memref<1x128xf32, #tpu.memory_space<any>>
    %c9_i32_28 = arith.constant 9 : i32
    %c0_i32_29 = arith.constant 0 : i32
    %47 = tpu.memref_slice %arg3[%c9_i32_28, %c0_i32_29] : memref<19x128xf32, #tpu.memory_space<vmem>> -> memref<1x128xf32, #tpu.memory_space<vmem>>
    %48 = tpu.memref_slice %arg4[%c9_i32] : memref<19x!tpu.dma_semaphore, #tpu.memory_space<semaphore_mem>> -> memref<1x!tpu.dma_semaphore, #tpu.memory_space<semaphore_mem>>
    %49 = tpu.memref_squeeze %48 : memref<1x!tpu.dma_semaphore, #tpu.memory_space<semaphore_mem>> -> memref<!tpu.dma_semaphore, #tpu.memory_space<semaphore_mem>>
    tpu.enqueue_dma source(%46 : memref<1x128xf32, #tpu.memory_space<any>>) target(%47 : memref<1x128xf32, #tpu.memory_space<vmem>>) target_semaphore(%49 : memref<!tpu.dma_semaphore, #tpu.memory_space<semaphore_mem>>)
    %c10 = arith.constant 10 : index
    %50 = memref.load %arg0[%c10] : memref<19xi32, #tpu.memory_space<smem>>
    %c10_i32 = arith.constant 10 : i32
    %c0_i32_30 = arith.constant 0 : i32
    %51 = tpu.memref_slice %arg1[%50, %c0_i32_30] : memref<128x128xf32, #tpu.memory_space<any>> -> memref<1x128xf32, #tpu.memory_space<any>>
    %c10_i32_31 = arith.constant 10 : i32
    %c0_i32_32 = arith.constant 0 : i32
    %52 = tpu.memref_slice %arg3[%c10_i32_31, %c0_i32_32] : memref<19x128xf32, #tpu.memory_space<vmem>> -> memref<1x128xf32, #tpu.memory_space<vmem>>
    %53 = tpu.memref_slice %arg4[%c10_i32] : memref<19x!tpu.dma_semaphore, #tpu.memory_space<semaphore_mem>> -> memref<1x!tpu.dma_semaphore, #tpu.memory_space<semaphore_mem>>
    %54 = tpu.memref_squeeze %53 : memref<1x!tpu.dma_semaphore, #tpu.memory_space<semaphore_mem>> -> memref<!tpu.dma_semaphore, #tpu.memory_space<semaphore_mem>>
    tpu.enqueue_dma source(%51 : memref<1x128xf32, #tpu.memory_space<any>>) target(%52 : memref<1x128xf32, #tpu.memory_space<vmem>>) target_semaphore(%54 : memref<!tpu.dma_semaphore, #tpu.memory_space<semaphore_mem>>)
    %c11 = arith.constant 11 : index
    %55 = memref.load %arg0[%c11] : memref<19xi32, #tpu.memory_space<smem>>
    %c11_i32 = arith.constant 11 : i32
    %c0_i32_33 = arith.constant 0 : i32
    %56 = tpu.memref_slice %arg1[%55, %c0_i32_33] : memref<128x128xf32, #tpu.memory_space<any>> -> memref<1x128xf32, #tpu.memory_space<any>>
    %c11_i32_34 = arith.constant 11 : i32
    %c0_i32_35 = arith.constant 0 : i32
    %57 = tpu.memref_slice %arg3[%c11_i32_34, %c0_i32_35] : memref<19x128xf32, #tpu.memory_space<vmem>> -> memref<1x128xf32, #tpu.memory_space<vmem>>
    %58 = tpu.memref_slice %arg4[%c11_i32] : memref<19x!tpu.dma_semaphore, #tpu.memory_space<semaphore_mem>> -> memref<1x!tpu.dma_semaphore, #tpu.memory_space<semaphore_mem>>
    %59 = tpu.memref_squeeze %58 : memref<1x!tpu.dma_semaphore, #tpu.memory_space<semaphore_mem>> -> memref<!tpu.dma_semaphore, #tpu.memory_space<semaphore_mem>>
    tpu.enqueue_dma source(%56 : memref<1x128xf32, #tpu.memory_space<any>>) target(%57 : memref<1x128xf32, #tpu.memory_space<vmem>>) target_semaphore(%59 : memref<!tpu.dma_semaphore, #tpu.memory_space<semaphore_mem>>)
    %c12 = arith.constant 12 : index
    %60 = memref.load %arg0[%c12] : memref<19xi32, #tpu.memory_space<smem>>
    %c12_i32 = arith.constant 12 : i32
    %c0_i32_36 = arith.constant 0 : i32
    %61 = tpu.memref_slice %arg1[%60, %c0_i32_36] : memref<128x128xf32, #tpu.memory_space<any>> -> memref<1x128xf32, #tpu.memory_space<any>>
    %c12_i32_37 = arith.constant 12 : i32
    %c0_i32_38 = arith.constant 0 : i32
    %62 = tpu.memref_slice %arg3[%c12_i32_37, %c0_i32_38] : memref<19x128xf32, #tpu.memory_space<vmem>> -> memref<1x128xf32, #tpu.memory_space<vmem>>
    %63 = tpu.memref_slice %arg4[%c12_i32] : memref<19x!tpu.dma_semaphore, #tpu.memory_space<semaphore_mem>> -> memref<1x!tpu.dma_semaphore, #tpu.memory_space<semaphore_mem>>
    %64 = tpu.memref_squeeze %63 : memref<1x!tpu.dma_semaphore, #tpu.memory_space<semaphore_mem>> -> memref<!tpu.dma_semaphore, #tpu.memory_space<semaphore_mem>>
    tpu.enqueue_dma source(%61 : memref<1x128xf32, #tpu.memory_space<any>>) target(%62 : memref<1x128xf32, #tpu.memory_space<vmem>>) target_semaphore(%64 : memref<!tpu.dma_semaphore, #tpu.memory_space<semaphore_mem>>)
    %c13 = arith.constant 13 : index
    %65 = memref.load %arg0[%c13] : memref<19xi32, #tpu.memory_space<smem>>
    %c13_i32 = arith.constant 13 : i32
    %c0_i32_39 = arith.constant 0 : i32
    %66 = tpu.memref_slice %arg1[%65, %c0_i32_39] : memref<128x128xf32, #tpu.memory_space<any>> -> memref<1x128xf32, #tpu.memory_space<any>>
    %c13_i32_40 = arith.constant 13 : i32
    %c0_i32_41 = arith.constant 0 : i32
    %67 = tpu.memref_slice %arg3[%c13_i32_40, %c0_i32_41] : memref<19x128xf32, #tpu.memory_space<vmem>> -> memref<1x128xf32, #tpu.memory_space<vmem>>
    %68 = tpu.memref_slice %arg4[%c13_i32] : memref<19x!tpu.dma_semaphore, #tpu.memory_space<semaphore_mem>> -> memref<1x!tpu.dma_semaphore, #tpu.memory_space<semaphore_mem>>
    %69 = tpu.memref_squeeze %68 : memref<1x!tpu.dma_semaphore, #tpu.memory_space<semaphore_mem>> -> memref<!tpu.dma_semaphore, #tpu.memory_space<semaphore_mem>>
    tpu.enqueue_dma source(%66 : memref<1x128xf32, #tpu.memory_space<any>>) target(%67 : memref<1x128xf32, #tpu.memory_space<vmem>>) target_semaphore(%69 : memref<!tpu.dma_semaphore, #tpu.memory_space<semaphore_mem>>)
    %c14 = arith.constant 14 : index
    %70 = memref.load %arg0[%c14] : memref<19xi32, #tpu.memory_space<smem>>
    %c14_i32 = arith.constant 14 : i32
    %c0_i32_42 = arith.constant 0 : i32
    %71 = tpu.memref_slice %arg1[%70, %c0_i32_42] : memref<128x128xf32, #tpu.memory_space<any>> -> memref<1x128xf32, #tpu.memory_space<any>>
    %c14_i32_43 = arith.constant 14 : i32
    %c0_i32_44 = arith.constant 0 : i32
    %72 = tpu.memref_slice %arg3[%c14_i32_43, %c0_i32_44] : memref<19x128xf32, #tpu.memory_space<vmem>> -> memref<1x128xf32, #tpu.memory_space<vmem>>
    %73 = tpu.memref_slice %arg4[%c14_i32] : memref<19x!tpu.dma_semaphore, #tpu.memory_space<semaphore_mem>> -> memref<1x!tpu.dma_semaphore, #tpu.memory_space<semaphore_mem>>
    %74 = tpu.memref_squeeze %73 : memref<1x!tpu.dma_semaphore, #tpu.memory_space<semaphore_mem>> -> memref<!tpu.dma_semaphore, #tpu.memory_space<semaphore_mem>>
    tpu.enqueue_dma source(%71 : memref<1x128xf32, #tpu.memory_space<any>>) target(%72 : memref<1x128xf32, #tpu.memory_space<vmem>>) target_semaphore(%74 : memref<!tpu.dma_semaphore, #tpu.memory_space<semaphore_mem>>)
    %c15 = arith.constant 15 : index
    %75 = memref.load %arg0[%c15] : memref<19xi32, #tpu.memory_space<smem>>
    %c15_i32 = arith.constant 15 : i32
    %c0_i32_45 = arith.constant 0 : i32
    %76 = tpu.memref_slice %arg1[%75, %c0_i32_45] : memref<128x128xf32, #tpu.memory_space<any>> -> memref<1x128xf32, #tpu.memory_space<any>>
    %c15_i32_46 = arith.constant 15 : i32
    %c0_i32_47 = arith.constant 0 : i32
    %77 = tpu.memref_slice %arg3[%c15_i32_46, %c0_i32_47] : memref<19x128xf32, #tpu.memory_space<vmem>> -> memref<1x128xf32, #tpu.memory_space<vmem>>
    %78 = tpu.memref_slice %arg4[%c15_i32] : memref<19x!tpu.dma_semaphore, #tpu.memory_space<semaphore_mem>> -> memref<1x!tpu.dma_semaphore, #tpu.memory_space<semaphore_mem>>
    %79 = tpu.memref_squeeze %78 : memref<1x!tpu.dma_semaphore, #tpu.memory_space<semaphore_mem>> -> memref<!tpu.dma_semaphore, #tpu.memory_space<semaphore_mem>>
    tpu.enqueue_dma source(%76 : memref<1x128xf32, #tpu.memory_space<any>>) target(%77 : memref<1x128xf32, #tpu.memory_space<vmem>>) target_semaphore(%79 : memref<!tpu.dma_semaphore, #tpu.memory_space<semaphore_mem>>)
    %c16 = arith.constant 16 : index
    %80 = memref.load %arg0[%c16] : memref<19xi32, #tpu.memory_space<smem>>
    %c16_i32 = arith.constant 16 : i32
    %c0_i32_48 = arith.constant 0 : i32
    %81 = tpu.memref_slice %arg1[%80, %c0_i32_48] : memref<128x128xf32, #tpu.memory_space<any>> -> memref<1x128xf32, #tpu.memory_space<any>>
    %c16_i32_49 = arith.constant 16 : i32
    %c0_i32_50 = arith.constant 0 : i32
    %82 = tpu.memref_slice %arg3[%c16_i32_49, %c0_i32_50] : memref<19x128xf32, #tpu.memory_space<vmem>> -> memref<1x128xf32, #tpu.memory_space<vmem>>
    %83 = tpu.memref_slice %arg4[%c16_i32] : memref<19x!tpu.dma_semaphore, #tpu.memory_space<semaphore_mem>> -> memref<1x!tpu.dma_semaphore, #tpu.memory_space<semaphore_mem>>
    %84 = tpu.memref_squeeze %83 : memref<1x!tpu.dma_semaphore, #tpu.memory_space<semaphore_mem>> -> memref<!tpu.dma_semaphore, #tpu.memory_space<semaphore_mem>>
    tpu.enqueue_dma source(%81 : memref<1x128xf32, #tpu.memory_space<any>>) target(%82 : memref<1x128xf32, #tpu.memory_space<vmem>>) target_semaphore(%84 : memref<!tpu.dma_semaphore, #tpu.memory_space<semaphore_mem>>)
    %c17 = arith.constant 17 : index
    %85 = memref.load %arg0[%c17] : memref<19xi32, #tpu.memory_space<smem>>
    %c17_i32 = arith.constant 17 : i32
    %c0_i32_51 = arith.constant 0 : i32
    %86 = tpu.memref_slice %arg1[%85, %c0_i32_51] : memref<128x128xf32, #tpu.memory_space<any>> -> memref<1x128xf32, #tpu.memory_space<any>>
    %c17_i32_52 = arith.constant 17 : i32
    %c0_i32_53 = arith.constant 0 : i32
    %87 = tpu.memref_slice %arg3[%c17_i32_52, %c0_i32_53] : memref<19x128xf32, #tpu.memory_space<vmem>> -> memref<1x128xf32, #tpu.memory_space<vmem>>
    %88 = tpu.memref_slice %arg4[%c17_i32] : memref<19x!tpu.dma_semaphore, #tpu.memory_space<semaphore_mem>> -> memref<1x!tpu.dma_semaphore, #tpu.memory_space<semaphore_mem>>
    %89 = tpu.memref_squeeze %88 : memref<1x!tpu.dma_semaphore, #tpu.memory_space<semaphore_mem>> -> memref<!tpu.dma_semaphore, #tpu.memory_space<semaphore_mem>>
    tpu.enqueue_dma source(%86 : memref<1x128xf32, #tpu.memory_space<any>>) target(%87 : memref<1x128xf32, #tpu.memory_space<vmem>>) target_semaphore(%89 : memref<!tpu.dma_semaphore, #tpu.memory_space<semaphore_mem>>)
    %c18 = arith.constant 18 : index
    %90 = memref.load %arg0[%c18] : memref<19xi32, #tpu.memory_space<smem>>
    %c18_i32 = arith.constant 18 : i32
    %c0_i32_54 = arith.constant 0 : i32
    %91 = tpu.memref_slice %arg1[%90, %c0_i32_54] : memref<128x128xf32, #tpu.memory_space<any>> -> memref<1x128xf32, #tpu.memory_space<any>>
    %c18_i32_55 = arith.constant 18 : i32
    %c0_i32_56 = arith.constant 0 : i32
    %92 = tpu.memref_slice %arg3[%c18_i32_55, %c0_i32_56] : memref<19x128xf32, #tpu.memory_space<vmem>> -> memref<1x128xf32, #tpu.memory_space<vmem>>
    %93 = tpu.memref_slice %arg4[%c18_i32] : memref<19x!tpu.dma_semaphore, #tpu.memory_space<semaphore_mem>> -> memref<1x!tpu.dma_semaphore, #tpu.memory_space<semaphore_mem>>
    %94 = tpu.memref_squeeze %93 : memref<1x!tpu.dma_semaphore, #tpu.memory_space<semaphore_mem>> -> memref<!tpu.dma_semaphore, #tpu.memory_space<semaphore_mem>>
    tpu.enqueue_dma source(%91 : memref<1x128xf32, #tpu.memory_space<any>>) target(%92 : memref<1x128xf32, #tpu.memory_space<vmem>>) target_semaphore(%94 : memref<!tpu.dma_semaphore, #tpu.memory_space<semaphore_mem>>)
    %c0_i32_57 = arith.constant 0 : i32
    %c0_i32_58 = arith.constant 0 : i32
    %95 = tpu.memref_slice %arg1[%0, %c0_i32_58] : memref<128x128xf32, #tpu.memory_space<any>> -> memref<1x128xf32, #tpu.memory_space<any>>
    %c0_i32_59 = arith.constant 0 : i32
    %c0_i32_60 = arith.constant 0 : i32
    %96 = tpu.memref_slice %arg3[%c0_i32_59, %c0_i32_60] : memref<19x128xf32, #tpu.memory_space<vmem>> -> memref<1x128xf32, #tpu.memory_space<vmem>>
    %97 = tpu.memref_slice %arg4[%c0_i32_57] : memref<19x!tpu.dma_semaphore, #tpu.memory_space<semaphore_mem>> -> memref<1x!tpu.dma_semaphore, #tpu.memory_space<semaphore_mem>>
    %98 = tpu.memref_squeeze %97 : memref<1x!tpu.dma_semaphore, #tpu.memory_space<semaphore_mem>> -> memref<!tpu.dma_semaphore, #tpu.memory_space<semaphore_mem>>
    tpu.wait_dma2 semaphore(%98 : memref<!tpu.dma_semaphore, #tpu.memory_space<semaphore_mem>>) src(%95 : memref<1x128xf32, #tpu.memory_space<any>>) dst(%96 : memref<1x128xf32, #tpu.memory_space<vmem>>)
    %c1_i32_61 = arith.constant 1 : i32
    %c0_i32_62 = arith.constant 0 : i32
    %99 = tpu.memref_slice %arg1[%5, %c0_i32_62] : memref<128x128xf32, #tpu.memory_space<any>> -> memref<1x128xf32, #tpu.memory_space<any>>
    %c1_i32_63 = arith.constant 1 : i32
    %c0_i32_64 = arith.constant 0 : i32
    %100 = tpu.memref_slice %arg3[%c1_i32_63, %c0_i32_64] : memref<19x128xf32, #tpu.memory_space<vmem>> -> memref<1x128xf32, #tpu.memory_space<vmem>>
    %101 = tpu.memref_slice %arg4[%c1_i32_61] : memref<19x!tpu.dma_semaphore, #tpu.memory_space<semaphore_mem>> -> memref<1x!tpu.dma_semaphore, #tpu.memory_space<semaphore_mem>>
    %102 = tpu.memref_squeeze %101 : memref<1x!tpu.dma_semaphore, #tpu.memory_space<semaphore_mem>> -> memref<!tpu.dma_semaphore, #tpu.memory_space<semaphore_mem>>
    tpu.wait_dma2 semaphore(%102 : memref<!tpu.dma_semaphore, #tpu.memory_space<semaphore_mem>>) src(%99 : memref<1x128xf32, #tpu.memory_space<any>>) dst(%100 : memref<1x128xf32, #tpu.memory_space<vmem>>)
    %c2_i32_65 = arith.constant 2 : i32
    %c0_i32_66 = arith.constant 0 : i32
    %103 = tpu.memref_slice %arg1[%10, %c0_i32_66] : memref<128x128xf32, #tpu.memory_space<any>> -> memref<1x128xf32, #tpu.memory_space<any>>
    %c2_i32_67 = arith.constant 2 : i32
    %c0_i32_68 = arith.constant 0 : i32
    %104 = tpu.memref_slice %arg3[%c2_i32_67, %c0_i32_68] : memref<19x128xf32, #tpu.memory_space<vmem>> -> memref<1x128xf32, #tpu.memory_space<vmem>>
    %105 = tpu.memref_slice %arg4[%c2_i32_65] : memref<19x!tpu.dma_semaphore, #tpu.memory_space<semaphore_mem>> -> memref<1x!tpu.dma_semaphore, #tpu.memory_space<semaphore_mem>>
    %106 = tpu.memref_squeeze %105 : memref<1x!tpu.dma_semaphore, #tpu.memory_space<semaphore_mem>> -> memref<!tpu.dma_semaphore, #tpu.memory_space<semaphore_mem>>
    tpu.wait_dma2 semaphore(%106 : memref<!tpu.dma_semaphore, #tpu.memory_space<semaphore_mem>>) src(%103 : memref<1x128xf32, #tpu.memory_space<any>>) dst(%104 : memref<1x128xf32, #tpu.memory_space<vmem>>)
    %c3_i32_69 = arith.constant 3 : i32
    %c0_i32_70 = arith.constant 0 : i32
    %107 = tpu.memref_slice %arg1[%15, %c0_i32_70] : memref<128x128xf32, #tpu.memory_space<any>> -> memref<1x128xf32, #tpu.memory_space<any>>
    %c3_i32_71 = arith.constant 3 : i32
    %c0_i32_72 = arith.constant 0 : i32
    %108 = tpu.memref_slice %arg3[%c3_i32_71, %c0_i32_72] : memref<19x128xf32, #tpu.memory_space<vmem>> -> memref<1x128xf32, #tpu.memory_space<vmem>>
    %109 = tpu.memref_slice %arg4[%c3_i32_69] : memref<19x!tpu.dma_semaphore, #tpu.memory_space<semaphore_mem>> -> memref<1x!tpu.dma_semaphore, #tpu.memory_space<semaphore_mem>>
    %110 = tpu.memref_squeeze %109 : memref<1x!tpu.dma_semaphore, #tpu.memory_space<semaphore_mem>> -> memref<!tpu.dma_semaphore, #tpu.memory_space<semaphore_mem>>
    tpu.wait_dma2 semaphore(%110 : memref<!tpu.dma_semaphore, #tpu.memory_space<semaphore_mem>>) src(%107 : memref<1x128xf32, #tpu.memory_space<any>>) dst(%108 : memref<1x128xf32, #tpu.memory_space<vmem>>)
    %c4_i32_73 = arith.constant 4 : i32
    %c0_i32_74 = arith.constant 0 : i32
    %111 = tpu.memref_slice %arg1[%20, %c0_i32_74] : memref<128x128xf32, #tpu.memory_space<any>> -> memref<1x128xf32, #tpu.memory_space<any>>
    %c4_i32_75 = arith.constant 4 : i32
    %c0_i32_76 = arith.constant 0 : i32
    %112 = tpu.memref_slice %arg3[%c4_i32_75, %c0_i32_76] : memref<19x128xf32, #tpu.memory_space<vmem>> -> memref<1x128xf32, #tpu.memory_space<vmem>>
    %113 = tpu.memref_slice %arg4[%c4_i32_73] : memref<19x!tpu.dma_semaphore, #tpu.memory_space<semaphore_mem>> -> memref<1x!tpu.dma_semaphore, #tpu.memory_space<semaphore_mem>>
    %114 = tpu.memref_squeeze %113 : memref<1x!tpu.dma_semaphore, #tpu.memory_space<semaphore_mem>> -> memref<!tpu.dma_semaphore, #tpu.memory_space<semaphore_mem>>
    tpu.wait_dma2 semaphore(%114 : memref<!tpu.dma_semaphore, #tpu.memory_space<semaphore_mem>>) src(%111 : memref<1x128xf32, #tpu.memory_space<any>>) dst(%112 : memref<1x128xf32, #tpu.memory_space<vmem>>)
    %c5_i32_77 = arith.constant 5 : i32
    %c0_i32_78 = arith.constant 0 : i32
    %115 = tpu.memref_slice %arg1[%25, %c0_i32_78] : memref<128x128xf32, #tpu.memory_space<any>> -> memref<1x128xf32, #tpu.memory_space<any>>
    %c5_i32_79 = arith.constant 5 : i32
    %c0_i32_80 = arith.constant 0 : i32
    %116 = tpu.memref_slice %arg3[%c5_i32_79, %c0_i32_80] : memref<19x128xf32, #tpu.memory_space<vmem>> -> memref<1x128xf32, #tpu.memory_space<vmem>>
    %117 = tpu.memref_slice %arg4[%c5_i32_77] : memref<19x!tpu.dma_semaphore, #tpu.memory_space<semaphore_mem>> -> memref<1x!tpu.dma_semaphore, #tpu.memory_space<semaphore_mem>>
    %118 = tpu.memref_squeeze %117 : memref<1x!tpu.dma_semaphore, #tpu.memory_space<semaphore_mem>> -> memref<!tpu.dma_semaphore, #tpu.memory_space<semaphore_mem>>
    tpu.wait_dma2 semaphore(%118 : memref<!tpu.dma_semaphore, #tpu.memory_space<semaphore_mem>>) src(%115 : memref<1x128xf32, #tpu.memory_space<any>>) dst(%116 : memref<1x128xf32, #tpu.memory_space<vmem>>)
    %c6_i32_81 = arith.constant 6 : i32
    %c0_i32_82 = arith.constant 0 : i32
    %119 = tpu.memref_slice %arg1[%30, %c0_i32_82] : memref<128x128xf32, #tpu.memory_space<any>> -> memref<1x128xf32, #tpu.memory_space<any>>
    %c6_i32_83 = arith.constant 6 : i32
    %c0_i32_84 = arith.constant 0 : i32
    %120 = tpu.memref_slice %arg3[%c6_i32_83, %c0_i32_84] : memref<19x128xf32, #tpu.memory_space<vmem>> -> memref<1x128xf32, #tpu.memory_space<vmem>>
    %121 = tpu.memref_slice %arg4[%c6_i32_81] : memref<19x!tpu.dma_semaphore, #tpu.memory_space<semaphore_mem>> -> memref<1x!tpu.dma_semaphore, #tpu.memory_space<semaphore_mem>>
    %122 = tpu.memref_squeeze %121 : memref<1x!tpu.dma_semaphore, #tpu.memory_space<semaphore_mem>> -> memref<!tpu.dma_semaphore, #tpu.memory_space<semaphore_mem>>
    tpu.wait_dma2 semaphore(%122 : memref<!tpu.dma_semaphore, #tpu.memory_space<semaphore_mem>>) src(%119 : memref<1x128xf32, #tpu.memory_space<any>>) dst(%120 : memref<1x128xf32, #tpu.memory_space<vmem>>)
    %c7_i32_85 = arith.constant 7 : i32
    %c0_i32_86 = arith.constant 0 : i32
    %123 = tpu.memref_slice %arg1[%35, %c0_i32_86] : memref<128x128xf32, #tpu.memory_space<any>> -> memref<1x128xf32, #tpu.memory_space<any>>
    %c7_i32_87 = arith.constant 7 : i32
    %c0_i32_88 = arith.constant 0 : i32
    %124 = tpu.memref_slice %arg3[%c7_i32_87, %c0_i32_88] : memref<19x128xf32, #tpu.memory_space<vmem>> -> memref<1x128xf32, #tpu.memory_space<vmem>>
    %125 = tpu.memref_slice %arg4[%c7_i32_85] : memref<19x!tpu.dma_semaphore, #tpu.memory_space<semaphore_mem>> -> memref<1x!tpu.dma_semaphore, #tpu.memory_space<semaphore_mem>>
    %126 = tpu.memref_squeeze %125 : memref<1x!tpu.dma_semaphore, #tpu.memory_space<semaphore_mem>> -> memref<!tpu.dma_semaphore, #tpu.memory_space<semaphore_mem>>
    tpu.wait_dma2 semaphore(%126 : memref<!tpu.dma_semaphore, #tpu.memory_space<semaphore_mem>>) src(%123 : memref<1x128xf32, #tpu.memory_space<any>>) dst(%124 : memref<1x128xf32, #tpu.memory_space<vmem>>)
    %c8_i32_89 = arith.constant 8 : i32
    %c0_i32_90 = arith.constant 0 : i32
    %127 = tpu.memref_slice %arg1[%40, %c0_i32_90] : memref<128x128xf32, #tpu.memory_space<any>> -> memref<1x128xf32, #tpu.memory_space<any>>
    %c8_i32_91 = arith.constant 8 : i32
    %c0_i32_92 = arith.constant 0 : i32
    %128 = tpu.memref_slice %arg3[%c8_i32_91, %c0_i32_92] : memref<19x128xf32, #tpu.memory_space<vmem>> -> memref<1x128xf32, #tpu.memory_space<vmem>>
    %129 = tpu.memref_slice %arg4[%c8_i32_89] : memref<19x!tpu.dma_semaphore, #tpu.memory_space<semaphore_mem>> -> memref<1x!tpu.dma_semaphore, #tpu.memory_space<semaphore_mem>>
    %130 = tpu.memref_squeeze %129 : memref<1x!tpu.dma_semaphore, #tpu.memory_space<semaphore_mem>> -> memref<!tpu.dma_semaphore, #tpu.memory_space<semaphore_mem>>
    tpu.wait_dma2 semaphore(%130 : memref<!tpu.dma_semaphore, #tpu.memory_space<semaphore_mem>>) src(%127 : memref<1x128xf32, #tpu.memory_space<any>>) dst(%128 : memref<1x128xf32, #tpu.memory_space<vmem>>)
    %c9_i32_93 = arith.constant 9 : i32
    %c0_i32_94 = arith.constant 0 : i32
    %131 = tpu.memref_slice %arg1[%45, %c0_i32_94] : memref<128x128xf32, #tpu.memory_space<any>> -> memref<1x128xf32, #tpu.memory_space<any>>
    %c9_i32_95 = arith.constant 9 : i32
    %c0_i32_96 = arith.constant 0 : i32
    %132 = tpu.memref_slice %arg3[%c9_i32_95, %c0_i32_96] : memref<19x128xf32, #tpu.memory_space<vmem>> -> memref<1x128xf32, #tpu.memory_space<vmem>>
    %133 = tpu.memref_slice %arg4[%c9_i32_93] : memref<19x!tpu.dma_semaphore, #tpu.memory_space<semaphore_mem>> -> memref<1x!tpu.dma_semaphore, #tpu.memory_space<semaphore_mem>>
    %134 = tpu.memref_squeeze %133 : memref<1x!tpu.dma_semaphore, #tpu.memory_space<semaphore_mem>> -> memref<!tpu.dma_semaphore, #tpu.memory_space<semaphore_mem>>
    tpu.wait_dma2 semaphore(%134 : memref<!tpu.dma_semaphore, #tpu.memory_space<semaphore_mem>>) src(%131 : memref<1x128xf32, #tpu.memory_space<any>>) dst(%132 : memref<1x128xf32, #tpu.memory_space<vmem>>)
    %c10_i32_97 = arith.constant 10 : i32
    %c0_i32_98 = arith.constant 0 : i32
    %135 = tpu.memref_slice %arg1[%50, %c0_i32_98] : memref<128x128xf32, #tpu.memory_space<any>> -> memref<1x128xf32, #tpu.memory_space<any>>
    %c10_i32_99 = arith.constant 10 : i32
    %c0_i32_100 = arith.constant 0 : i32
    %136 = tpu.memref_slice %arg3[%c10_i32_99, %c0_i32_100] : memref<19x128xf32, #tpu.memory_space<vmem>> -> memref<1x128xf32, #tpu.memory_space<vmem>>
    %137 = tpu.memref_slice %arg4[%c10_i32_97] : memref<19x!tpu.dma_semaphore, #tpu.memory_space<semaphore_mem>> -> memref<1x!tpu.dma_semaphore, #tpu.memory_space<semaphore_mem>>
    %138 = tpu.memref_squeeze %137 : memref<1x!tpu.dma_semaphore, #tpu.memory_space<semaphore_mem>> -> memref<!tpu.dma_semaphore, #tpu.memory_space<semaphore_mem>>
    tpu.wait_dma2 semaphore(%138 : memref<!tpu.dma_semaphore, #tpu.memory_space<semaphore_mem>>) src(%135 : memref<1x128xf32, #tpu.memory_space<any>>) dst(%136 : memref<1x128xf32, #tpu.memory_space<vmem>>)
    %c11_i32_101 = arith.constant 11 : i32
    %c0_i32_102 = arith.constant 0 : i32
    %139 = tpu.memref_slice %arg1[%55, %c0_i32_102] : memref<128x128xf32, #tpu.memory_space<any>> -> memref<1x128xf32, #tpu.memory_space<any>>
    %c11_i32_103 = arith.constant 11 : i32
    %c0_i32_104 = arith.constant 0 : i32
    %140 = tpu.memref_slice %arg3[%c11_i32_103, %c0_i32_104] : memref<19x128xf32, #tpu.memory_space<vmem>> -> memref<1x128xf32, #tpu.memory_space<vmem>>
    %141 = tpu.memref_slice %arg4[%c11_i32_101] : memref<19x!tpu.dma_semaphore, #tpu.memory_space<semaphore_mem>> -> memref<1x!tpu.dma_semaphore, #tpu.memory_space<semaphore_mem>>
    %142 = tpu.memref_squeeze %141 : memref<1x!tpu.dma_semaphore, #tpu.memory_space<semaphore_mem>> -> memref<!tpu.dma_semaphore, #tpu.memory_space<semaphore_mem>>
    tpu.wait_dma2 semaphore(%142 : memref<!tpu.dma_semaphore, #tpu.memory_space<semaphore_mem>>) src(%139 : memref<1x128xf32, #tpu.memory_space<any>>) dst(%140 : memref<1x128xf32, #tpu.memory_space<vmem>>)
    %c12_i32_105 = arith.constant 12 : i32
    %c0_i32_106 = arith.constant 0 : i32
    %143 = tpu.memref_slice %arg1[%60, %c0_i32_106] : memref<128x128xf32, #tpu.memory_space<any>> -> memref<1x128xf32, #tpu.memory_space<any>>
    %c12_i32_107 = arith.constant 12 : i32
    %c0_i32_108 = arith.constant 0 : i32
    %144 = tpu.memref_slice %arg3[%c12_i32_107, %c0_i32_108] : memref<19x128xf32, #tpu.memory_space<vmem>> -> memref<1x128xf32, #tpu.memory_space<vmem>>
    %145 = tpu.memref_slice %arg4[%c12_i32_105] : memref<19x!tpu.dma_semaphore, #tpu.memory_space<semaphore_mem>> -> memref<1x!tpu.dma_semaphore, #tpu.memory_space<semaphore_mem>>
    %146 = tpu.memref_squeeze %145 : memref<1x!tpu.dma_semaphore, #tpu.memory_space<semaphore_mem>> -> memref<!tpu.dma_semaphore, #tpu.memory_space<semaphore_mem>>
    tpu.wait_dma2 semaphore(%146 : memref<!tpu.dma_semaphore, #tpu.memory_space<semaphore_mem>>) src(%143 : memref<1x128xf32, #tpu.memory_space<any>>) dst(%144 : memref<1x128xf32, #tpu.memory_space<vmem>>)
    %c13_i32_109 = arith.constant 13 : i32
    %c0_i32_110 = arith.constant 0 : i32
    %147 = tpu.memref_slice %arg1[%65, %c0_i32_110] : memref<128x128xf32, #tpu.memory_space<any>> -> memref<1x128xf32, #tpu.memory_space<any>>
    %c13_i32_111 = arith.constant 13 : i32
    %c0_i32_112 = arith.constant 0 : i32
    %148 = tpu.memref_slice %arg3[%c13_i32_111, %c0_i32_112] : memref<19x128xf32, #tpu.memory_space<vmem>> -> memref<1x128xf32, #tpu.memory_space<vmem>>
    %149 = tpu.memref_slice %arg4[%c13_i32_109] : memref<19x!tpu.dma_semaphore, #tpu.memory_space<semaphore_mem>> -> memref<1x!tpu.dma_semaphore, #tpu.memory_space<semaphore_mem>>
    %150 = tpu.memref_squeeze %149 : memref<1x!tpu.dma_semaphore, #tpu.memory_space<semaphore_mem>> -> memref<!tpu.dma_semaphore, #tpu.memory_space<semaphore_mem>>
    tpu.wait_dma2 semaphore(%150 : memref<!tpu.dma_semaphore, #tpu.memory_space<semaphore_mem>>) src(%147 : memref<1x128xf32, #tpu.memory_space<any>>) dst(%148 : memref<1x128xf32, #tpu.memory_space<vmem>>)
    %c14_i32_113 = arith.constant 14 : i32
    %c0_i32_114 = arith.constant 0 : i32
    %151 = tpu.memref_slice %arg1[%70, %c0_i32_114] : memref<128x128xf32, #tpu.memory_space<any>> -> memref<1x128xf32, #tpu.memory_space<any>>
    %c14_i32_115 = arith.constant 14 : i32
    %c0_i32_116 = arith.constant 0 : i32
    %152 = tpu.memref_slice %arg3[%c14_i32_115, %c0_i32_116] : memref<19x128xf32, #tpu.memory_space<vmem>> -> memref<1x128xf32, #tpu.memory_space<vmem>>
    %153 = tpu.memref_slice %arg4[%c14_i32_113] : memref<19x!tpu.dma_semaphore, #tpu.memory_space<semaphore_mem>> -> memref<1x!tpu.dma_semaphore, #tpu.memory_space<semaphore_mem>>
    %154 = tpu.memref_squeeze %153 : memref<1x!tpu.dma_semaphore, #tpu.memory_space<semaphore_mem>> -> memref<!tpu.dma_semaphore, #tpu.memory_space<semaphore_mem>>
    tpu.wait_dma2 semaphore(%154 : memref<!tpu.dma_semaphore, #tpu.memory_space<semaphore_mem>>) src(%151 : memref<1x128xf32, #tpu.memory_space<any>>) dst(%152 : memref<1x128xf32, #tpu.memory_space<vmem>>)
    %c15_i32_117 = arith.constant 15 : i32
    %c0_i32_118 = arith.constant 0 : i32
    %155 = tpu.memref_slice %arg1[%75, %c0_i32_118] : memref<128x128xf32, #tpu.memory_space<any>> -> memref<1x128xf32, #tpu.memory_space<any>>
    %c15_i32_119 = arith.constant 15 : i32
    %c0_i32_120 = arith.constant 0 : i32
    %156 = tpu.memref_slice %arg3[%c15_i32_119, %c0_i32_120] : memref<19x128xf32, #tpu.memory_space<vmem>> -> memref<1x128xf32, #tpu.memory_space<vmem>>
    %157 = tpu.memref_slice %arg4[%c15_i32_117] : memref<19x!tpu.dma_semaphore, #tpu.memory_space<semaphore_mem>> -> memref<1x!tpu.dma_semaphore, #tpu.memory_space<semaphore_mem>>
    %158 = tpu.memref_squeeze %157 : memref<1x!tpu.dma_semaphore, #tpu.memory_space<semaphore_mem>> -> memref<!tpu.dma_semaphore, #tpu.memory_space<semaphore_mem>>
    tpu.wait_dma2 semaphore(%158 : memref<!tpu.dma_semaphore, #tpu.memory_space<semaphore_mem>>) src(%155 : memref<1x128xf32, #tpu.memory_space<any>>) dst(%156 : memref<1x128xf32, #tpu.memory_space<vmem>>)
    %c16_i32_121 = arith.constant 16 : i32
    %c0_i32_122 = arith.constant 0 : i32
    %159 = tpu.memref_slice %arg1[%80, %c0_i32_122] : memref<128x128xf32, #tpu.memory_space<any>> -> memref<1x128xf32, #tpu.memory_space<any>>
    %c16_i32_123 = arith.constant 16 : i32
    %c0_i32_124 = arith.constant 0 : i32
    %160 = tpu.memref_slice %arg3[%c16_i32_123, %c0_i32_124] : memref<19x128xf32, #tpu.memory_space<vmem>> -> memref<1x128xf32, #tpu.memory_space<vmem>>
    %161 = tpu.memref_slice %arg4[%c16_i32_121] : memref<19x!tpu.dma_semaphore, #tpu.memory_space<semaphore_mem>> -> memref<1x!tpu.dma_semaphore, #tpu.memory_space<semaphore_mem>>
    %162 = tpu.memref_squeeze %161 : memref<1x!tpu.dma_semaphore, #tpu.memory_space<semaphore_mem>> -> memref<!tpu.dma_semaphore, #tpu.memory_space<semaphore_mem>>
    tpu.wait_dma2 semaphore(%162 : memref<!tpu.dma_semaphore, #tpu.memory_space<semaphore_mem>>) src(%159 : memref<1x128xf32, #tpu.memory_space<any>>) dst(%160 : memref<1x128xf32, #tpu.memory_space<vmem>>)
    %c17_i32_125 = arith.constant 17 : i32
    %c0_i32_126 = arith.constant 0 : i32
    %163 = tpu.memref_slice %arg1[%85, %c0_i32_126] : memref<128x128xf32, #tpu.memory_space<any>> -> memref<1x128xf32, #tpu.memory_space<any>>
    %c17_i32_127 = arith.constant 17 : i32
    %c0_i32_128 = arith.constant 0 : i32
    %164 = tpu.memref_slice %arg3[%c17_i32_127, %c0_i32_128] : memref<19x128xf32, #tpu.memory_space<vmem>> -> memref<1x128xf32, #tpu.memory_space<vmem>>
    %165 = tpu.memref_slice %arg4[%c17_i32_125] : memref<19x!tpu.dma_semaphore, #tpu.memory_space<semaphore_mem>> -> memref<1x!tpu.dma_semaphore, #tpu.memory_space<semaphore_mem>>
    %166 = tpu.memref_squeeze %165 : memref<1x!tpu.dma_semaphore, #tpu.memory_space<semaphore_mem>> -> memref<!tpu.dma_semaphore, #tpu.memory_space<semaphore_mem>>
    tpu.wait_dma2 semaphore(%166 : memref<!tpu.dma_semaphore, #tpu.memory_space<semaphore_mem>>) src(%163 : memref<1x128xf32, #tpu.memory_space<any>>) dst(%164 : memref<1x128xf32, #tpu.memory_space<vmem>>)
    %c18_i32_129 = arith.constant 18 : i32
    %c0_i32_130 = arith.constant 0 : i32
    %167 = tpu.memref_slice %arg1[%90, %c0_i32_130] : memref<128x128xf32, #tpu.memory_space<any>> -> memref<1x128xf32, #tpu.memory_space<any>>
    %c18_i32_131 = arith.constant 18 : i32
    %c0_i32_132 = arith.constant 0 : i32
    %168 = tpu.memref_slice %arg3[%c18_i32_131, %c0_i32_132] : memref<19x128xf32, #tpu.memory_space<vmem>> -> memref<1x128xf32, #tpu.memory_space<vmem>>
    %169 = tpu.memref_slice %arg4[%c18_i32_129] : memref<19x!tpu.dma_semaphore, #tpu.memory_space<semaphore_mem>> -> memref<1x!tpu.dma_semaphore, #tpu.memory_space<semaphore_mem>>
    %170 = tpu.memref_squeeze %169 : memref<1x!tpu.dma_semaphore, #tpu.memory_space<semaphore_mem>> -> memref<!tpu.dma_semaphore, #tpu.memory_space<semaphore_mem>>
    tpu.wait_dma2 semaphore(%170 : memref<!tpu.dma_semaphore, #tpu.memory_space<semaphore_mem>>) src(%167 : memref<1x128xf32, #tpu.memory_space<any>>) dst(%168 : memref<1x128xf32, #tpu.memory_space<vmem>>)
    %c0_133 = arith.constant 0 : index
    %c0_134 = arith.constant 0 : index
    %171 = vector.load %arg3[%c0_133, %c0_134] : memref<19x128xf32, #tpu.memory_space<vmem>>, vector<19x128xf32>
    %c0_135 = arith.constant 0 : index
    %c0_136 = arith.constant 0 : index
    %172 = vector.load %arg2[%c0_135, %c0_136] : memref<19x128xf32, #tpu.memory_space<vmem>>, vector<19x128xf32>
    tpu.vector_store %arg2[%c0_135, %c0_136], %171 {strides = array<i32>} : memref<19x128xf32, #tpu.memory_space<vmem>>, vector<19x128xf32>,
    return
  }
}

</mosaic_0001>

<llo_original>
// kernel: tpu_custom_call.1
$region0: #{tpu_custom_call.1}
  #allocation0 [shape = 'u32[]', space=smem, size = 0x4, offset = 0x4, fixed_abs, tag = 'smem constant byte address 0x4 - core index']
  #allocation1 [shape = 'u32[144,128]{1,0:T(1,128)}', space=vmem, size = 0x12000, scoped, tag = 'internal scratch']
  #allocation2 [shape = 'f32[19,128]{1,0:T(8,128)}', space=vmem, size = 0x3000, scoped, tag = 'scratch operand']
  #allocation3 [shape = 's32[19]{0}', space=sflag, size = 0x4c, scoped, tag = 'scratch operand']
  #allocation8 [shape = 's32[]', space=sflag, size = 0x4, offset = 0, fixed_abs, tag = 'sflag constant byte address 0x0 - dummy sync flag']
  #allocation9 [shape = 's32[]', space=sflag, size = 0x4, offset = 0, fixed_abs, tag = 'sflag constant byte address 0x0 - dummy sync flag']
  #allocation10 [shape = 'u32[]', space=smem, size = 0x4, offset = 0x44, fixed_abs, tag = 'smem constant byte address 0x44 - assertion arg 0']
  #allocation11 [shape = 'u32[]', space=smem, size = 0x4, offset = 0x48, fixed_abs, tag = 'smem constant byte address 0x48 - assertion arg 1']
  #allocation12 [shape = 's32[]', space=sflag, size = 0x4, offset = 0, fixed_abs, tag = 'sflag constant byte address 0x0 - dummy sync flag']
  #allocation13 [shape = 's32[]', space=sflag, size = 0x4, offset = 0, fixed_abs, tag = 'sflag constant byte address 0x0 - dummy sync flag']
  #allocation14 [shape = 's32[]', space=sflag, size = 0x4, offset = 0, fixed_abs, tag = 'sflag constant byte address 0x0 - dummy sync flag']
  #allocation15 [shape = 's32[]', space=sflag, size = 0x4, offset = 0, fixed_abs, tag = 'sflag constant byte address 0x0 - dummy sync flag']
  #allocation16 [shape = 's32[]', space=sflag, size = 0x4, offset = 0, fixed_abs, tag = 'sflag constant byte address 0x0 - dummy sync flag']
  #allocation17 [shape = 's32[]', space=sflag, size = 0x4, offset = 0, fixed_abs, tag = 'sflag constant byte address 0x0 - dummy sync flag']
  #allocation18 [shape = 's32[]', space=sflag, size = 0x4, offset = 0, fixed_abs, tag = 'sflag constant byte address 0x0 - dummy sync flag']
  #allocation19 [shape = 's32[]', space=sflag, size = 0x4, offset = 0, fixed_abs, tag = 'sflag constant byte address 0x0 - dummy sync flag']
  #allocation20 [shape = 's32[]', space=sflag, size = 0x4, offset = 0, fixed_abs, tag = 'sflag constant byte address 0x0 - dummy sync flag']
  #allocation21 [shape = 's32[]', space=sflag, size = 0x4, offset = 0, fixed_abs, tag = 'sflag constant byte address 0x0 - dummy sync flag']
  #allocation22 [shape = 's32[]', space=sflag, size = 0x4, offset = 0, fixed_abs, tag = 'sflag constant byte address 0x0 - dummy sync flag']
  #allocation23 [shape = 's32[]', space=sflag, size = 0x4, offset = 0, fixed_abs, tag = 'sflag constant byte address 0x0 - dummy sync flag']
  #allocation24 [shape = 's32[]', space=sflag, size = 0x4, offset = 0, fixed_abs, tag = 'sflag constant byte address 0x0 - dummy sync flag']
  #allocation25 [shape = 's32[]', space=sflag, size = 0x4, offset = 0, fixed_abs, tag = 'sflag constant byte address 0x0 - dummy sync flag']
  #allocation26 [shape = 's32[]', space=sflag, size = 0x4, offset = 0, fixed_abs, tag = 'sflag constant byte address 0x0 - dummy sync flag']
  #allocation27 [shape = 's32[]', space=sflag, size = 0x4, offset = 0, fixed_abs, tag = 'sflag constant byte address 0x0 - dummy sync flag']
  #allocation28 [shape = 's32[]', space=sflag, size = 0x4, offset = 0, fixed_abs, tag = 'sflag constant byte address 0x0 - dummy sync flag']
  #allocation29 [shape = 's32[]', space=sflag, size = 0x4, offset = 0, fixed_abs, tag = 'sflag constant byte address 0x0 - dummy sync flag']
  #allocation30 [shape = 's32[]', space=sflag, size = 0x4, offset = 0, fixed_abs, tag = 'sflag constant byte address 0x0 - dummy sync flag']
  #allocation31 [shape = 's32[]', space=sflag, size = 0x4, offset = 0, fixed_abs, tag = 'sflag constant byte address 0x0 - dummy sync flag']
  #allocation32 [shape = 's32[]', space=sflag, size = 0x4, offset = 0, fixed_abs, tag = 'sflag constant byte address 0x0 - dummy sync flag']
  #allocation33 [shape = 's32[]', space=sflag, size = 0x4, offset = 0, fixed_abs, tag = 'sflag constant byte address 0x0 - dummy sync flag']
  #allocation34 [shape = 's32[]', space=sflag, size = 0x4, offset = 0, fixed_abs, tag = 'sflag constant byte address 0x0 - dummy sync flag']
  #allocation35 [shape = 's32[]', space=sflag, size = 0x4, offset = 0, fixed_abs, tag = 'sflag constant byte address 0x0 - dummy sync flag']
  #allocation36 [shape = 's32[]', space=sflag, size = 0x4, offset = 0, fixed_abs, tag = 'sflag constant byte address 0x0 - dummy sync flag']
  #allocation37 [shape = 's32[]', space=sflag, size = 0x4, offset = 0, fixed_abs, tag = 'sflag constant byte address 0x0 - dummy sync flag']
  #allocation38 [shape = 's32[]', space=sflag, size = 0x4, offset = 0, fixed_abs, tag = 'sflag constant byte address 0x0 - dummy sync flag']
  #allocation39 [shape = 's32[]', space=sflag, size = 0x4, offset = 0, fixed_abs, tag = 'sflag constant byte address 0x0 - dummy sync flag']
  #allocation40 [shape = 's32[]', space=sflag, size = 0x4, offset = 0, fixed_abs, tag = 'sflag constant byte address 0x0 - dummy sync flag']
  #allocation41 [shape = 's32[]', space=sflag, size = 0x4, offset = 0, fixed_abs, tag = 'sflag constant byte address 0x0 - dummy sync flag']
  #allocation42 [shape = 's32[]', space=sflag, size = 0x4, offset = 0, fixed_abs, tag = 'sflag constant byte address 0x0 - dummy sync flag']
  #allocation43 [shape = 's32[]', space=sflag, size = 0x4, offset = 0, fixed_abs, tag = 'sflag constant byte address 0x0 - dummy sync flag']
  #allocation44 [shape = 's32[]', space=sflag, size = 0x4, offset = 0, fixed_abs, tag = 'sflag constant byte address 0x0 - dummy sync flag']
  #allocation45 [shape = 's32[]', space=sflag, size = 0x4, offset = 0, fixed_abs, tag = 'sflag constant byte address 0x0 - dummy sync flag']
  #allocation46 [shape = 's32[]', space=sflag, size = 0x4, offset = 0, fixed_abs, tag = 'sflag constant byte address 0x0 - dummy sync flag']
  #allocation47 [shape = 's32[]', space=sflag, size = 0x4, offset = 0, fixed_abs, tag = 'sflag constant byte address 0x0 - dummy sync flag']
  %s0 = inlined_call_operand.hbm [shape: s32[19], index: 0, kind: input, shape index: {}]
  %s1 = inlined_call_operand.hbm [shape: f32[128,128], index: 1, kind: input, shape index: {}]
  %s2 = inlined_call_operand.hbm [shape: f32[19,128], index: 2, kind: output, shape index: {}]
  %s3 = sld [smem:[#allocation0]]
  $region94: #{tpu_custom_call.1} parent=0
    _
  %s5 = ssub.s32 1, %s3
  %s6 = scalar_select 0, %s5, %s3
  $region1: #{tpu_custom_call.1} parent=0
    #allocation4 [shape = 'u8[512]{0}', space=smem, size = 0x200, scoped, tag = 'input window, operand 0, single buffered']
    #allocation5 [shape = 's32[1]{0}', space=sflag, size = 0x4, scoped, tag = 'scoped memory for tpu_custom_call.1']
    #allocation6 [shape = 's32[1]{0}', space=sflag, size = 0x4, scoped, tag = 'scoped memory for tpu_custom_call.1']
    #allocation7 [shape = 'u8[12288]{0}', space=vmem, size = 0x3000, scoped, tag = 'output window, operand 0, single buffered']
    %7 = vsyncpa [#allocation6], 0
    %8 = vsyncpa [#allocation5], 0
    // Predicated region
    $region2: #{tpu_custom_call.1} parent=1 // pred_check
      _
    $region3: #{tpu_custom_call.1} parent=1 // pred_check_branch
      %10 = sbr.rel (0) target = $region5
    $region4: #{tpu_custom_call.1} parent=1 // pred_region
      %s12 = ssub.s32 16, 16
      %13 = vsyncadd [#allocation6], %s12
      %16 = dma.hbm_to_smem %s0, 16, [#allocation4], [#allocation6]
    $region5: #{tpu_custom_call.1} parent=1 // pred_fallthru
      _
    // Predicated region
    $region6: #{tpu_custom_call.1} parent=1 // pred_check
      _
    $region7: #{tpu_custom_call.1} parent=1 // pred_check_branch
      %18 = sbr.rel (0) target = $region9
    $region8: #{tpu_custom_call.1} parent=1 // pred_region
      %19 = dma.done [#allocation6], 16
    $region9: #{tpu_custom_call.1} parent=1 // pred_fallthru
      _
    %20 = sfence
    %s21 = sld [smem:[#allocation4]]
    %s22 = smul.addr %s21, 16
    %s23 = scalar_lea.hbm %s1, %s22
    // Predicated region
    $region10: #{tpu_custom_call.1} parent=1 // pred_check
      _
    $region11: #{tpu_custom_call.1} parent=1 // pred_check_branch
      %25 = sbr.rel target = $region13
    $region12: #{tpu_custom_call.1} parent=1 // pred_region
      %26 = sst [smem:[#allocation10]] [#allocation9]
      %27 = sst [smem:[#allocation11]] [#allocation8]
    $region13: #{tpu_custom_call.1} parent=1 // pred_fallthru
      _
    %29 = shalt.err (0)
    %s31 = sshll.u32 [#allocation2], 4
    %s32 = int_to_ptr.vmem [resolvable:$true] %s31
    %34 = dma.hbm_to_vmem [thread:$0]  %s23, 16, %s32, [#allocation3]
    %s35 = sld [smem:[#allocation4 + $0x1]]
    %s36 = smul.addr %s35, 16
    %s37 = scalar_lea.hbm %s1, %s36
    %s38 = scalar_lea.vmem [#allocation2], 1
    %s39 = scalar_lea.sflag [#allocation3], 1
    // Predicated region
    $region14: #{tpu_custom_call.1} parent=1 // pred_check
      _
    $region15: #{tpu_custom_call.1} parent=1 // pred_check_branch
      %41 = sbr.rel target = $region17
    $region16: #{tpu_custom_call.1} parent=1 // pred_region
      %42 = sst [smem:[#allocation10]] [#allocation13]
      %43 = sst [smem:[#allocation11]] [#allocation12]
    $region17: #{tpu_custom_call.1} parent=1 // pred_fallthru
      _
    %45 = shalt.err (0)
    %s47 = sshll.u32 %s38, 4
    %s48 = int_to_ptr.vmem [resolvable:$true] %s47
    %50 = dma.hbm_to_vmem [thread:$0]  %s37, 16, %s48, %s39
    %s51 = sld [smem:[#allocation4 + $0x2]]
    %s52 = smul.addr %s51, 16
    %s53 = scalar_lea.hbm %s1, %s52
    %s54 = scalar_lea.vmem [#allocation2], 2
    %s55 = scalar_lea.sflag [#allocation3], 2
    // Predicated region
    $region18: #{tpu_custom_call.1} parent=1 // pred_check
      _
    $region19: #{tpu_custom_call.1} parent=1 // pred_check_branch
      %57 = sbr.rel target = $region21
    $region20: #{tpu_custom_call.1} parent=1 // pred_region
      %58 = sst [smem:[#allocation10]] [#allocation15]
      %59 = sst [smem:[#allocation11]] [#allocation14]
    $region21: #{tpu_custom_call.1} parent=1 // pred_fallthru
      _
    %61 = shalt.err (0)
    %s63 = sshll.u32 %s54, 4
    %s64 = int_to_ptr.vmem [resolvable:$true] %s63
    %66 = dma.hbm_to_vmem [thread:$0]  %s53, 16, %s64, %s55
    %s67 = sld [smem:[#allocation4 + $0x3]]
    %s68 = smul.addr %s67, 16
    %s69 = scalar_lea.hbm %s1, %s68
    %s70 = scalar_lea.vmem [#allocation2], 3
    %s71 = scalar_lea.sflag [#allocation3], 3
    // Predicated region
    $region22: #{tpu_custom_call.1} parent=1 // pred_check
      _
    $region23: #{tpu_custom_call.1} parent=1 // pred_check_branch
      %73 = sbr.rel target = $region25
    $region24: #{tpu_custom_call.1} parent=1 // pred_region
      %74 = sst [smem:[#allocation10]] [#allocation17]
      %75 = sst [smem:[#allocation11]] [#allocation16]
    $region25: #{tpu_custom_call.1} parent=1 // pred_fallthru
      _
    %77 = shalt.err (0)
    %s79 = sshll.u32 %s70, 4
    %s80 = int_to_ptr.vmem [resolvable:$true] %s79
    %82 = dma.hbm_to_vmem [thread:$0]  %s69, 16, %s80, %s71
    %s83 = sld [smem:[#allocation4 + $0x4]]
    %s84 = smul.addr %s83, 16
    %s85 = scalar_lea.hbm %s1, %s84
    %s86 = scalar_lea.vmem [#allocation2], 4
    %s87 = scalar_lea.sflag [#allocation3], 4
    // Predicated region
    $region26: #{tpu_custom_call.1} parent=1 // pred_check
      _
    $region27: #{tpu_custom_call.1} parent=1 // pred_check_branch
      %89 = sbr.rel target = $region29
    $region28: #{tpu_custom_call.1} parent=1 // pred_region
      %90 = sst [smem:[#allocation10]] [#allocation19]
      %91 = sst [smem:[#allocation11]] [#allocation18]
    $region29: #{tpu_custom_call.1} parent=1 // pred_fallthru
      _
    %93 = shalt.err (0)
    %s95 = sshll.u32 %s86, 4
    %s96 = int_to_ptr.vmem [resolvable:$true] %s95
    %98 = dma.hbm_to_vmem [thread:$0]  %s85, 16, %s96, %s87
    %s99 = sld [smem:[#allocation4 + $0x5]]
    %s100 = smul.addr %s99, 16
    %s101 = scalar_lea.hbm %s1, %s100
    %s102 = scalar_lea.vmem [#allocation2], 5
    %s103 = scalar_lea.sflag [#allocation3], 5
    // Predicated region
    $region30: #{tpu_custom_call.1} parent=1 // pred_check
      _
    $region31: #{tpu_custom_call.1} parent=1 // pred_check_branch
      %105 = sbr.rel target = $region33
    $region32: #{tpu_custom_call.1} parent=1 // pred_region
      %106 = sst [smem:[#allocation10]] [#allocation21]
      %107 = sst [smem:[#allocation11]] [#allocation20]
    $region33: #{tpu_custom_call.1} parent=1 // pred_fallthru
      _
    %109 = shalt.err (0)
    %s111 = sshll.u32 %s102, 4
    %s112 = int_to_ptr.vmem [resolvable:$true] %s111
    %114 = dma.hbm_to_vmem [thread:$0]  %s101, 16, %s112, %s103
    %s115 = sld [smem:[#allocation4 + $0x6]]
    %s116 = smul.addr %s115, 16
    %s117 = scalar_lea.hbm %s1, %s116
    %s118 = scalar_lea.vmem [#allocation2], 6
    %s119 = scalar_lea.sflag [#allocation3], 6
    // Predicated region
    $region34: #{tpu_custom_call.1} parent=1 // pred_check
      _
    $region35: #{tpu_custom_call.1} parent=1 // pred_check_branch
      %121 = sbr.rel target = $region37
    $region36: #{tpu_custom_call.1} parent=1 // pred_region
      %122 = sst [smem:[#allocation10]] [#allocation23]
      %123 = sst [smem:[#allocation11]] [#allocation22]
    $region37: #{tpu_custom_call.1} parent=1 // pred_fallthru
      _
    %125 = shalt.err (0)
    %s127 = sshll.u32 %s118, 4
    %s128 = int_to_ptr.vmem [resolvable:$true] %s127
    %130 = dma.hbm_to_vmem [thread:$0]  %s117, 16, %s128, %s119
    %s131 = sld [smem:[#allocation4 + $0x7]]
    %s132 = smul.addr %s131, 16
    %s133 = scalar_lea.hbm %s1, %s132
    %s134 = scalar_lea.vmem [#allocation2], 7
    %s135 = scalar_lea.sflag [#allocation3], 7
    // Predicated region
    $region38: #{tpu_custom_call.1} parent=1 // pred_check
      _
    $region39: #{tpu_custom_call.1} parent=1 // pred_check_branch
      %137 = sbr.rel target = $region41
    $region40: #{tpu_custom_call.1} parent=1 // pred_region
      %138 = sst [smem:[#allocation10]] [#allocation25]
      %139 = sst [smem:[#allocation11]] [#allocation24]
    $region41: #{tpu_custom_call.1} parent=1 // pred_fallthru
      _
    %141 = shalt.err (0)
    %s143 = sshll.u32 %s134, 4
    %s144 = int_to_ptr.vmem [resolvable:$true] %s143
    %146 = dma.hbm_to_vmem [thread:$0]  %s133, 16, %s144, %s135
    %s147 = sld [smem:[#allocation4 + $0x8]]
    %s148 = smul.addr %s147, 16
    %s149 = scalar_lea.hbm %s1, %s148
    %s150 = scalar_lea.vmem [#allocation2], 8
    %s151 = scalar_lea.sflag [#allocation3], 8
    // Predicated region
    $region42: #{tpu_custom_call.1} parent=1 // pred_check
      _
    $region43: #{tpu_custom_call.1} parent=1 // pred_check_branch
      %153 = sbr.rel target = $region45
    $region44: #{tpu_custom_call.1} parent=1 // pred_region
      %154 = sst [smem:[#allocation10]] [#allocation27]
      %155 = sst [smem:[#allocation11]] [#allocation26]
    $region45: #{tpu_custom_call.1} parent=1 // pred_fallthru
      _
    %157 = shalt.err (0)
    %s159 = sshll.u32 %s150, 4
    %s160 = int_to_ptr.vmem [resolvable:$true] %s159
    %162 = dma.hbm_to_vmem [thread:$0]  %s149, 16, %s160, %s151
    %s163 = sld [smem:[#allocation4 + $0x9]]
    %s164 = smul.addr %s163, 16
    %s165 = scalar_lea.hbm %s1, %s164
    %s166 = scalar_lea.vmem [#allocation2], 9
    %s167 = scalar_lea.sflag [#allocation3], 9
    // Predicated region
    $region46: #{tpu_custom_call.1} parent=1 // pred_check
      _
    $region47: #{tpu_custom_call.1} parent=1 // pred_check_branch
      %169 = sbr.rel target = $region49
    $region48: #{tpu_custom_call.1} parent=1 // pred_region
      %170 = sst [smem:[#allocation10]] [#allocation29]
      %171 = sst [smem:[#allocation11]] [#allocation28]
    $region49: #{tpu_custom_call.1} parent=1 // pred_fallthru
      _
    %173 = shalt.err (0)
    %s175 = sshll.u32 %s166, 4
    %s176 = int_to_ptr.vmem [resolvable:$true] %s175
    %178 = dma.hbm_to_vmem [thread:$0]  %s165, 16, %s176, %s167
    %s179 = sld [smem:[#allocation4 + $0xa]]
    %s180 = smul.addr %s179, 16
    %s181 = scalar_lea.hbm %s1, %s180
    %s182 = scalar_lea.vmem [#allocation2], 10
    %s183 = scalar_lea.sflag [#allocation3], 10
    // Predicated region
    $region50: #{tpu_custom_call.1} parent=1 // pred_check
      _
    $region51: #{tpu_custom_call.1} parent=1 // pred_check_branch
      %185 = sbr.rel target = $region53
    $region52: #{tpu_custom_call.1} parent=1 // pred_region
      %186 = sst [smem:[#allocation10]] [#allocation31]
      %187 = sst [smem:[#allocation11]] [#allocation30]
    $region53: #{tpu_custom_call.1} parent=1 // pred_fallthru
      _
    %189 = shalt.err (0)
    %s191 = sshll.u32 %s182, 4
    %s192 = int_to_ptr.vmem [resolvable:$true] %s191
    %194 = dma.hbm_to_vmem [thread:$0]  %s181, 16, %s192, %s183
    %s195 = sld [smem:[#allocation4 + $0xb]]
    %s196 = smul.addr %s195, 16
    %s197 = scalar_lea.hbm %s1, %s196
    %s198 = scalar_lea.vmem [#allocation2], 11
    %s199 = scalar_lea.sflag [#allocation3], 11
    // Predicated region
    $region54: #{tpu_custom_call.1} parent=1 // pred_check
      _
    $region55: #{tpu_custom_call.1} parent=1 // pred_check_branch
      %201 = sbr.rel target = $region57
    $region56: #{tpu_custom_call.1} parent=1 // pred_region
      %202 = sst [smem:[#allocation10]] [#allocation33]
      %203 = sst [smem:[#allocation11]] [#allocation32]
    $region57: #{tpu_custom_call.1} parent=1 // pred_fallthru
      _
    %205 = shalt.err (0)
    %s207 = sshll.u32 %s198, 4
    %s208 = int_to_ptr.vmem [resolvable:$true] %s207
    %210 = dma.hbm_to_vmem [thread:$0]  %s197, 16, %s208, %s199
    %s211 = sld [smem:[#allocation4 + $0xc]]
    %s212 = smul.addr %s211, 16
    %s213 = scalar_lea.hbm %s1, %s212
    %s214 = scalar_lea.vmem [#allocation2], 12
    %s215 = scalar_lea.sflag [#allocation3], 12
    // Predicated region
    $region58: #{tpu_custom_call.1} parent=1 // pred_check
      _
    $region59: #{tpu_custom_call.1} parent=1 // pred_check_branch
      %217 = sbr.rel target = $region61
    $region60: #{tpu_custom_call.1} parent=1 // pred_region
      %218 = sst [smem:[#allocation10]] [#allocation35]
      %219 = sst [smem:[#allocation11]] [#allocation34]
    $region61: #{tpu_custom_call.1} parent=1 // pred_fallthru
      _
    %221 = shalt.err (0)
    %s223 = sshll.u32 %s214, 4
    %s224 = int_to_ptr.vmem [resolvable:$true] %s223
    %226 = dma.hbm_to_vmem [thread:$0]  %s213, 16, %s224, %s215
    %s227 = sld [smem:[#allocation4 + $0xd]]
    %s228 = smul.addr %s227, 16
    %s229 = scalar_lea.hbm %s1, %s228
    %s230 = scalar_lea.vmem [#allocation2], 13
    %s231 = scalar_lea.sflag [#allocation3], 13
    // Predicated region
    $region62: #{tpu_custom_call.1} parent=1 // pred_check
      _
    $region63: #{tpu_custom_call.1} parent=1 // pred_check_branch
      %233 = sbr.rel target = $region65
    $region64: #{tpu_custom_call.1} parent=1 // pred_region
      %234 = sst [smem:[#allocation10]] [#allocation37]
      %235 = sst [smem:[#allocation11]] [#allocation36]
    $region65: #{tpu_custom_call.1} parent=1 // pred_fallthru
      _
    %237 = shalt.err (0)
    %s239 = sshll.u32 %s230, 4
    %s240 = int_to_ptr.vmem [resolvable:$true] %s239
    %242 = dma.hbm_to_vmem [thread:$0]  %s229, 16, %s240, %s231
    %s243 = sld [smem:[#allocation4 + $0xe]]
    %s244 = smul.addr %s243, 16
    %s245 = scalar_lea.hbm %s1, %s244
    %s246 = scalar_lea.vmem [#allocation2], 14
    %s247 = scalar_lea.sflag [#allocation3], 14
    // Predicated region
    $region66: #{tpu_custom_call.1} parent=1 // pred_check
      _
    $region67: #{tpu_custom_call.1} parent=1 // pred_check_branch
      %249 = sbr.rel target = $region69
    $region68: #{tpu_custom_call.1} parent=1 // pred_region
      %250 = sst [smem:[#allocation10]] [#allocation39]
      %251 = sst [smem:[#allocation11]] [#allocation38]
    $region69: #{tpu_custom_call.1} parent=1 // pred_fallthru
      _
    %253 = shalt.err (0)
    %s255 = sshll.u32 %s246, 4
    %s256 = int_to_ptr.vmem [resolvable:$true] %s255
    %258 = dma.hbm_to_vmem [thread:$0]  %s245, 16, %s256, %s247
    %s259 = sld [smem:[#allocation4 + $0xf]]
    %s260 = smul.addr %s259, 16
    %s261 = scalar_lea.hbm %s1, %s260
    %s262 = scalar_lea.vmem [#allocation2], 15
    %s263 = scalar_lea.sflag [#allocation3], 15
    // Predicated region
    $region70: #{tpu_custom_call.1} parent=1 // pred_check
      _
    $region71: #{tpu_custom_call.1} parent=1 // pred_check_branch
      %265 = sbr.rel target = $region73
    $region72: #{tpu_custom_call.1} parent=1 // pred_region
      %266 = sst [smem:[#allocation10]] [#allocation41]
      %267 = sst [smem:[#allocation11]] [#allocation40]
    $region73: #{tpu_custom_call.1} parent=1 // pred_fallthru
      _
    %269 = shalt.err (0)
    %s271 = sshll.u32 %s262, 4
    %s272 = int_to_ptr.vmem [resolvable:$true] %s271
    %274 = dma.hbm_to_vmem [thread:$0]  %s261, 16, %s272, %s263
    %s275 = sld [smem:[#allocation4 + $0x10]]
    %s276 = smul.addr %s275, 16
    %s277 = scalar_lea.hbm %s1, %s276
    %s278 = scalar_lea.vmem [#allocation2], 16
    %s279 = scalar_lea.sflag [#allocation3], 16
    // Predicated region
    $region74: #{tpu_custom_call.1} parent=1 // pred_check
      _
    $region75: #{tpu_custom_call.1} parent=1 // pred_check_branch
      %281 = sbr.rel target = $region77
    $region76: #{tpu_custom_call.1} parent=1 // pred_region
      %282 = sst [smem:[#allocation10]] [#allocation43]
      %283 = sst [smem:[#allocation11]] [#allocation42]
    $region77: #{tpu_custom_call.1} parent=1 // pred_fallthru
      _
    %285 = shalt.err (0)
    %s287 = sshll.u32 %s278, 4
    %s288 = int_to_ptr.vmem [resolvable:$true] %s287
    %290 = dma.hbm_to_vmem [thread:$0]  %s277, 16, %s288, %s279
    %s291 = sld [smem:[#allocation4 + $0x11]]
    %s292 = smul.addr %s291, 16
    %s293 = scalar_lea.hbm %s1, %s292
    %s294 = scalar_lea.vmem [#allocation2], 17
    %s295 = scalar_lea.sflag [#allocation3], 17
    // Predicated region
    $region78: #{tpu_custom_call.1} parent=1 // pred_check
      _
    $region79: #{tpu_custom_call.1} parent=1 // pred_check_branch
      %297 = sbr.rel target = $region81
    $region80: #{tpu_custom_call.1} parent=1 // pred_region
      %298 = sst [smem:[#allocation10]] [#allocation45]
      %299 = sst [smem:[#allocation11]] [#allocation44]
    $region81: #{tpu_custom_call.1} parent=1 // pred_fallthru
      _
    %301 = shalt.err (0)
    %s303 = sshll.u32 %s294, 4
    %s304 = int_to_ptr.vmem [resolvable:$true] %s303
    %306 = dma.hbm_to_vmem [thread:$0]  %s293, 16, %s304, %s295
    %s307 = sld [smem:[#allocation4 + $0x12]]
    %s308 = smul.addr %s307, 16
    %s309 = scalar_lea.hbm %s1, %s308
    %s310 = scalar_lea.vmem [#allocation2], 18
    %s311 = scalar_lea.sflag [#allocation3], 18
    // Predicated region
    $region82: #{tpu_custom_call.1} parent=1 // pred_check
      _
    $region83: #{tpu_custom_call.1} parent=1 // pred_check_branch
      %313 = sbr.rel target = $region85
    $region84: #{tpu_custom_call.1} parent=1 // pred_region
      %314 = sst [smem:[#allocation10]] [#allocation47]
      %315 = sst [smem:[#allocation11]] [#allocation46]
    $region85: #{tpu_custom_call.1} parent=1 // pred_fallthru
      _
    %317 = shalt.err (0)
    %s319 = sshll.u32 %s310, 4
    %s320 = int_to_ptr.vmem [resolvable:$true] %s319
    %322 = dma.hbm_to_vmem [thread:$0]  %s309, 16, %s320, %s311
    %s323 = smul.u32 1, 1
    %s324 = sshll.u32 %s323, 4
    %325 = dma.done [#allocation3], %s324
    %s326 = sshll.u32 %s323, 4
    %327 = dma.done %s39, %s326
    %s328 = sshll.u32 %s323, 4
    %329 = dma.done %s55, %s328
    %s330 = sshll.u32 %s323, 4
    %331 = dma.done %s71, %s330
    %s332 = sshll.u32 %s323, 4
    %333 = dma.done %s87, %s332
    %s334 = sshll.u32 %s323, 4
    %335 = dma.done %s103, %s334
    %s336 = sshll.u32 %s323, 4
    %337 = dma.done %s119, %s336
    %s338 = sshll.u32 %s323, 4
    %339 = dma.done %s135, %s338
    %s340 = sshll.u32 %s323, 4
    %341 = dma.done %s151, %s340
    %s342 = sshll.u32 %s323, 4
    %343 = dma.done %s167, %s342
    %s344 = sshll.u32 %s323, 4
    %345 = dma.done %s183, %s344
    %s346 = sshll.u32 %s323, 4
    %347 = dma.done %s199, %s346
    %s348 = sshll.u32 %s323, 4
    %349 = dma.done %s215, %s348
    %s350 = sshll.u32 %s323, 4
    %351 = dma.done %s231, %s350
    %s352 = sshll.u32 %s323, 4
    %353 = dma.done %s247, %s352
    %s354 = sshll.u32 %s323, 4
    %355 = dma.done %s263, %s354
    %s356 = sshll.u32 %s323, 4
    %357 = dma.done %s279, %s356
    %s358 = sshll.u32 %s323, 4
    %359 = dma.done %s295, %s358
    %s360 = sshll.u32 %s323, 4
    %361 = dma.done %s311, %s360
    %v362 = vld [vmem:[#allocation2] sm:$0xff]
    %v363 = vld [vmem:[#allocation2 + $0x8] sm:$0xff]
    %v364 = vld [vmem:[#allocation2 + $0x10] sm:$0x7]
    %365 = vst [vmem:[#allocation7] sm:$0xff] %v362
    %366 = vst [vmem:[#allocation7 + $0x8] sm:$0xff] %v363
    %367 = vst [vmem:[#allocation7 + $0x10] sm:$0x7] %v364
    // Predicated region
    $region86: #{tpu_custom_call.1} parent=1 // pred_check
      _
    $region87: #{tpu_custom_call.1} parent=1 // pred_check_branch
      %369 = sbr.rel (0) target = $region89
    $region88: #{tpu_custom_call.1} parent=1 // pred_region
      %s371 = ssub.s32 384, 384
      %372 = vsyncadd [#allocation5], %s371
      %s373 = sshll.u32 [#allocation7], 4
      %s374 = int_to_ptr.vmem [resolvable:$true] %s373
      %379 = dma.vmem_to_hbm [thread:$0]  %s374, 384, %s2, [#allocation5], 128, 128, 8
    $region89: #{tpu_custom_call.1} parent=1 // pred_fallthru
      _
    // Predicated region
    $region90: #{tpu_custom_call.1} parent=1 // pred_check
      _
    $region91: #{tpu_custom_call.1} parent=1 // pred_check_branch
      %381 = sbr.rel (0) target = $region93
    $region92: #{tpu_custom_call.1} parent=1 // pred_region
      %382 = dma.done [#allocation5], 384
    $region93: #{tpu_custom_call.1} parent=1 // pred_fallthru
      _
    %383 = vsyncpa [#allocation5], 1
    %384 = vsyncpa [#allocation6], 1
  %385 = vsyncmov [#allocation3]
  %s386 = vpop.sfrf %385
  %p387 = scmp.eq.s32.totalorder %s386, 0
  %p388 = pneg %p387
  %390 = shalt.err (%p388)
  %s391 = scalar_lea.sflag [#allocation3], 1
  %392 = vsyncmov %s391
  %s393 = vpop.sfrf %392
  %p394 = scmp.eq.s32.totalorder %s393, 0
  %p395 = pneg %p394
  %397 = shalt.err (%p395)
  %s398 = scalar_lea.sflag [#allocation3], 2
  %399 = vsyncmov %s398
  %s400 = vpop.sfrf %399
  %p401 = scmp.eq.s32.totalorder %s400, 0
  %p402 = pneg %p401
  %404 = shalt.err (%p402)
  %s405 = scalar_lea.sflag [#allocation3], 3
  %406 = vsyncmov %s405
  %s407 = vpop.sfrf %406
  %p408 = scmp.eq.s32.totalorder %s407, 0
  %p409 = pneg %p408
  %411 = shalt.err (%p409)
  %s412 = scalar_lea.sflag [#allocation3], 4
  %413 = vsyncmov %s412
  %s414 = vpop.sfrf %413
  %p415 = scmp.eq.s32.totalorder %s414, 0
  %p416 = pneg %p415
  %418 = shalt.err (%p416)
  %s419 = scalar_lea.sflag [#allocation3], 5
  %420 = vsyncmov %s419
  %s421 = vpop.sfrf %420
  %p422 = scmp.eq.s32.totalorder %s421, 0
  %p423 = pneg %p422
  %425 = shalt.err (%p423)
  %s426 = scalar_lea.sflag [#allocation3], 6
  %427 = vsyncmov %s426
  %s428 = vpop.sfrf %427
  %p429 = scmp.eq.s32.totalorder %s428, 0
  %p430 = pneg %p429
  %432 = shalt.err (%p430)
  %s433 = scalar_lea.sflag [#allocation3], 7
  %434 = vsyncmov %s433
  %s435 = vpop.sfrf %434
  %p436 = scmp.eq.s32.totalorder %s435, 0
  %p437 = pneg %p436
  %439 = shalt.err (%p437)
  %s440 = scalar_lea.sflag [#allocation3], 8
  %441 = vsyncmov %s440
  %s442 = vpop.sfrf %441
  %p443 = scmp.eq.s32.totalorder %s442, 0
  %p444 = pneg %p443
  %446 = shalt.err (%p444)
  %s447 = scalar_lea.sflag [#allocation3], 9
  %448 = vsyncmov %s447
  %s449 = vpop.sfrf %448
  %p450 = scmp.eq.s32.totalorder %s449, 0
  %p451 = pneg %p450
  %453 = shalt.err (%p451)
  %s454 = scalar_lea.sflag [#allocation3], 10
  %455 = vsyncmov %s454
  %s456 = vpop.sfrf %455
  %p457 = scmp.eq.s32.totalorder %s456, 0
  %p458 = pneg %p457
  %460 = shalt.err (%p458)
  %s461 = scalar_lea.sflag [#allocation3], 11
  %462 = vsyncmov %s461
  %s463 = vpop.sfrf %462
  %p464 = scmp.eq.s32.totalorder %s463, 0
  %p465 = pneg %p464
  %467 = shalt.err (%p465)
  %s468 = scalar_lea.sflag [#allocation3], 12
  %469 = vsyncmov %s468
  %s470 = vpop.sfrf %469
  %p471 = scmp.eq.s32.totalorder %s470, 0
  %p472 = pneg %p471
  %474 = shalt.err (%p472)
  %s475 = scalar_lea.sflag [#allocation3], 13
  %476 = vsyncmov %s475
  %s477 = vpop.sfrf %476
  %p478 = scmp.eq.s32.totalorder %s477, 0
  %p479 = pneg %p478
  %481 = shalt.err (%p479)
  %s482 = scalar_lea.sflag [#allocation3], 14
  %483 = vsyncmov %s482
  %s484 = vpop.sfrf %483
  %p485 = scmp.eq.s32.totalorder %s484, 0
  %p486 = pneg %p485
  %488 = shalt.err (%p486)
  %s489 = scalar_lea.sflag [#allocation3], 15
  %490 = vsyncmov %s489
  %s491 = vpop.sfrf %490
  %p492 = scmp.eq.s32.totalorder %s491, 0
  %p493 = pneg %p492
  %495 = shalt.err (%p493)
  %s496 = scalar_lea.sflag [#allocation3], 16
  %497 = vsyncmov %s496
  %s498 = vpop.sfrf %497
  %p499 = scmp.eq.s32.totalorder %s498, 0
  %p500 = pneg %p499
  %502 = shalt.err (%p500)
  %s503 = scalar_lea.sflag [#allocation3], 17
  %504 = vsyncmov %s503
  %s505 = vpop.sfrf %504
  %p506 = scmp.eq.s32.totalorder %s505, 0
  %p507 = pneg %p506
  %509 = shalt.err (%p507)
  %s510 = scalar_lea.sflag [#allocation3], 18
  %511 = vsyncmov %s510
  %s512 = vpop.sfrf %511
  %p513 = scmp.eq.s32.totalorder %s512, 0
  %p514 = pneg %p513
  %516 = shalt.err (%p514)

</llo_original>
